<compile_context>
chip_gen: v7x
topology: tpu7x:2x2x1
jax: 0.10.0
libtpu: 0.0.40
codegen_flags: <defaults>
</compile_context>

<pallas_src>
import functools
import math

import jax
import jax.numpy as jnp
import numpy as np
from jax import lax
from jax.experimental import pallas as pl
from jax.experimental.pallas import tpu as pltpu

KERNEL_SIZE = 3
DILATION = 2
# receptive_field = (3-1)*2 + 1 = 5 (odd) -> padding = 2, remove = 0
PAD = ((KERNEL_SIZE - 1) * DILATION + 1) // 2
HALO = 2 * PAD            # per-side input halo needed by the fused conv1+conv2
LANE = 128

_SQRT_2_OVER_PI = 0.7978845608028654


def _round_up(x, m):
    return ((x + m - 1) // m) * m


def _gelu_tanh(x):
    # tanh-form GELU: one EUP tanh per element (|err| vs exact erf-GELU < 1e-3, inside test tol).
    return 0.5 * x * (1.0 + jnp.tanh(_SQRT_2_OVER_PI * (x + 0.044715 * (x * x * x))))


# ---------------------------------------------------------------------------
# Fused kernel.  One (batch, seq-tile, pf-chunk) per grid step; pf-chunk is the innermost,
# "arbitrary" (reduction-like) axis.
def _ffn_kernel(x_hbm, w1_ref, b1_ref, w2_ref, b2_ref, o_ref,
                x_win, x_cat, h_ref, acc2, copy_sem, *, seq_len):
    # Shapes (C = hidden_p, F = pf_chunk, TS = seq tile):
    #   x_hbm : (B, s_pad + 4*PAD, C)  bf16, HBM (pl.ANY) — windows DMA'd manually
    #   w1_ref: (K*C, F)    bf16   conv1, taps folded into the contraction dim
    #   b1_ref: (1, F)      f32
    #   w2_ref: (K, F, C)   bf16   conv2, per-tap matrices for this pf chunk
    #   b2_ref: (1, C)      f32
    #   o_ref : (TS, C)
    #   x_win : (TS+4*PAD, C)    bf16 scratch (DMA landing buffer)
    #   x_cat : (TS+2*PAD, K*C)  bf16 scratch (tap-concatenated input, built once per tile)
    #   h_ref : (TS+2*PAD, F)    bf16 scratch (GELU(conv1) for this pf chunk)
    #   acc2  : (TS, C)          f32  scratch (conv2 accumulator across pf chunks)
    ts = o_ref.shape[0]
    hidden_p = o_ref.shape[1]
    h_rows = ts + 2 * PAD
    win = ts + 4 * PAD

    b = pl.program_id(0)
    j = pl.program_id(1)
    c = pl.program_id(2)

    @pl.when(c == 0)
    def _():
        # Fetch this tile's halo-extended input window straight from HBM (no wrapper gather).
        row0 = pl.multiple_of(j * ts, 8)
        cp = pltpu.make_async_copy(x_hbm.at[b, pl.ds(row0, win), :], x_win, copy_sem)
        cp.start()
        cp.wait()
        # Fold the 3 dilation taps into the contraction dimension once per tile; reused by every
        # pf chunk (hoisted out of the chunk steps).  Lane offsets are 128-aligned.
        for k in range(KERNEL_SIZE):
            x_cat[:, k * hidden_p:(k + 1) * hidden_p] = x_win[pl.ds(k * DILATION, h_rows), :]
        acc2[...] = jnp.zeros_like(acc2)

    # ---- conv1 (this pf chunk): one long-K MXU matmul + bias + GELU + edge masking -------------
    h = jnp.dot(x_cat[...], w1_ref[...], preferred_element_type=jnp.float32) + b1_ref[...]
    # conv2 must see ZEROS for conv1-output positions outside [0, seq_len) (PyTorch zero-pads the
    # conv1 *output*; it never evaluates conv1 out of range).
    row = lax.broadcasted_iota(jnp.int32, (h_rows, 1), 0)
    t_h = j * ts - PAD + row
    h_valid = jnp.logical_and(t_h >= 0, t_h < seq_len)
    h_ref[...] = jnp.where(h_valid, _gelu_tanh(h), 0.0).astype(jnp.bfloat16)

    # Dropout: inference-mode identity.
    # TODO(synk): training-mode dropout (RNG masking) not implemented; forward here is eval mode.

    # ---- conv2 (this pf chunk): 3 taps, full-chunk contraction, small (TS, C) accumulator ------
    acc = acc2[...]
    for k in range(KERNEL_SIZE):
        acc = acc + jnp.dot(h_ref[pl.ds(k * DILATION, ts), :], w2_ref[k],
                            preferred_element_type=jnp.float32)
    acc2[...] = acc

    @pl.when(c == pl.num_programs(2) - 1)
    def _():
        o_ref[...] = (acc2[...] + b2_ref[...]).astype(o_ref.dtype)


def positionwise_feedforward(x, params, *, tile_seq=None, pf_chunk=512):
    """x: (B, S, hidden_dim) -> (B, S, hidden_dim).  Dropout = inference identity."""
    B, S, hidden = x.shape
    pf = params["w1"].shape[0]

    # Channel padding to lane multiples (exact: zero channels / zero weight rows-cols contribute
    # nothing and padded output channels are sliced off).  Keeps every MXU operand and the output
    # store lane-dense.
    hidden_p = _round_up(hidden, LANE)
    pf_c = min(int(pf_chunk), _round_up(pf, LANE))       # streamed pf slab per grid step
    pf_p = _round_up(pf, pf_c)
    n_c = pf_p // pf_c

    # Seq tile: big enough to amortize the ~0.35 us/step overhead and the 2*PAD halo recompute,
    # small enough that scratch + streamed weight slabs + 2x(out tile) stay well under ~40 MiB
    # (v7x has 64 MiB VMEM; v5e/v6e have 128 MiB).
    if tile_seq is None:
        tile_seq = min(1024, _round_up(S, 8))
    ts = int(_round_up(tile_seq, 8))
    s_pad = _round_up(S, ts)
    n_t = s_pad // ts
    win = ts + 2 * HALO                                   # input rows per tile window

    # ---- weights: per-tap matrices, channel-padded, bf16 MXU operands ---------------------------
    w1 = jnp.transpose(params["w1"], (2, 1, 0))                                  # (K, hidden, pf)
    w1 = jnp.pad(w1, ((0, 0), (0, hidden_p - hidden), (0, pf_p - pf)))
    w1 = w1.reshape(KERNEL_SIZE * hidden_p, pf_p).astype(jnp.bfloat16)           # taps folded in K
    w2 = jnp.transpose(params["w2"], (2, 1, 0))                                  # (K, pf, hidden)
    w2 = jnp.pad(w2, ((0, 0), (0, pf_p - pf), (0, hidden_p - hidden))).astype(jnp.bfloat16)
    b1 = jnp.pad(params["b1"], (0, pf_p - pf)).reshape(1, pf_p).astype(jnp.float32)
    b2 = jnp.pad(params["b2"], (0, hidden_p - hidden)).reshape(1, hidden_p).astype(jnp.float32)

    # bf16 input, zero-padded ONCE in HBM (2*PAD halo per side for the two fused convs, plus right
    # padding up to whole seq tiles, plus channel padding).  No per-tile gather: overlapping
    # windows are DMA'd inside the kernel.
    x_pad = jnp.pad(x.astype(jnp.bfloat16),
                    ((0, 0), (HALO, HALO + (s_pad - S)), (0, hidden_p - hidden)))

    kern = functools.partial(_ffn_kernel, seq_len=S)

    flops = 2 * B * n_t * n_c * ((ts + 2 * PAD) * (KERNEL_SIZE * hidden_p) * pf_c
                                 + KERNEL_SIZE * ts * pf_c * hidden_p)
    weight_bytes = B * n_t * (w1.size + w2.size) * w1.dtype.itemsize       # re-streamed per tile
    bytes_accessed = int(x_pad.size * x_pad.dtype.itemsize + weight_bytes
                         + B * s_pad * hidden_p * x.dtype.itemsize)
    cost = pl.CostEstimate(flops=int(flops),
                           transcendentals=int(B * n_t * n_c * (ts + 2 * PAD) * pf_c),
                           bytes_accessed=bytes_accessed)

    out = pl.pallas_call(
        kern,
        out_shape=jax.ShapeDtypeStruct((B, s_pad, hidden_p), x.dtype),
        grid_spec=pltpu.PrefetchScalarGridSpec(
            num_scalar_prefetch=0,
            grid=(B, n_t, n_c),
            in_specs=[
                # input stays in HBM; per-tile windows are fetched with an in-kernel DMA
                pl.BlockSpec(memory_space=pl.ANY),
                # streamed weight / bias slabs for pf chunk c (double-buffered by the pipeline)
                pl.BlockSpec((KERNEL_SIZE * hidden_p, pf_c), lambda b, j, c: (0, c)),
                pl.BlockSpec((1, pf_c), lambda b, j, c: (0, c)),
                pl.BlockSpec((KERNEL_SIZE, pf_c, hidden_p), lambda b, j, c: (0, c, 0)),
                pl.BlockSpec((1, hidden_p), lambda b, j, c: (0, 0)),
            ],
            out_specs=pl.BlockSpec((None, ts, hidden_p), lambda b, j, c: (b, j, 0)),
            scratch_shapes=[
                pltpu.VMEM((win, hidden_p), jnp.bfloat16),                          # x_win
                pltpu.VMEM((ts + 2 * PAD, KERNEL_SIZE * hidden_p), jnp.bfloat16),   # x_cat
                pltpu.VMEM((ts + 2 * PAD, pf_c), jnp.bfloat16),                     # h chunk (bf16)
                pltpu.VMEM((ts, hidden_p), jnp.float32),                            # conv2 acc
                pltpu.SemaphoreType.DMA,                                            # window DMA sem
            ],
        ),
        compiler_params=pltpu.CompilerParams(
            # (B, n_t) shard across TensorCores; pf-chunk is the sequential reduction axis.
            dimension_semantics=("parallel", "parallel", "arbitrary"),
            vmem_limit_bytes=48 * 1024 * 1024,
        ),
        cost_estimate=cost,
    )(x_pad, w1, b1, w2, b2)

    return out[:, :S, :hidden]


# ---------------------------------------------------------------------------
# Pure-JAX reference mirroring the PyTorch graph (NCW dilated conv, exact erf GELU, f32).
def _ref_forward(x, params):
    x_ncw = jnp.transpose(x, (0, 2, 1))

    def conv(z, w, b):
        out = lax.conv_general_dilated(
            z, w, window_strides=(1,), padding=[(PAD, PAD)], rhs_dilation=(DILATION,),
            dimension_numbers=("NCH", "OIH", "NCH"), precision=lax.Precision.HIGHEST)
        return out + b[None, :, None]

    h = conv(x_ncw, params["w1"], params["b1"])
    h = 0.5 * h * (1.0 + lax.erf(h / jnp.sqrt(2.0)))      # exact GELU (PyTorch default)
    y = conv(h, params["w2"], params["b2"])
    return jnp.transpose(y, (0, 2, 1))


if __name__ == "__main__":
    B, S, hidden_dim, pf_dim = 2, 16, 32, 64

    key = jax.random.PRNGKey(0)
    k1, k2, k3, k4, kx = jax.random.split(key, 5)

    # Deterministic init mimicking PyTorch Conv1d default (uniform(-1/sqrt(fan_in*k), ...)).
    bound1 = 1.0 / math.sqrt(hidden_dim * KERNEL_SIZE)
    bound2 = 1.0 / math.sqrt(pf_dim * KERNEL_SIZE)
    params = {
        "w1": jax.random.uniform(k1, (pf_dim, hidden_dim, KERNEL_SIZE), jnp.float32, -bound1, bound1),
        "b1": jax.random.uniform(k2, (pf_dim,), jnp.float32, -bound1, bound1),
        "w2": jax.random.uniform(k3, (hidden_dim, pf_dim, KERNEL_SIZE), jnp.float32, -bound2, bound2),
        "b2": jax.random.uniform(k4, (hidden_dim,), jnp.float32, -bound2, bound2),
    }
    x = jax.random.normal(kx, (B, S, hidden_dim), jnp.float32)

    y = jax.block_until_ready(positionwise_feedforward(x, params))
    y_ref = jax.block_until_ready(_ref_forward(x, params))

    assert y.shape == (B, S, hidden_dim), y.shape
    # Tolerance accounts for bf16 MXU operands / bf16 input cast (f32 accumulation) + tanh-GELU.
    np.testing.assert_allclose(np.asarray(y), np.asarray(y_ref), atol=1e-2, rtol=2e-2)
    print("KERNEL_OK")
</pallas_src>

<mosaic_0001>
module attributes {stable_mosaic.version = 11 : i64} {
  func.func @_ffn_kernel(%arg0: i32, %arg1: i32, %arg2: i32, %arg3: memref<2x24x128xbf16, #tpu.memory_space<any>>, %arg4: memref<384x128xbf16, #tpu.memory_space<vmem>>, %arg5: memref<1x128xf32, #tpu.memory_space<vmem>>, %arg6: memref<3x128x128xbf16, #tpu.memory_space<vmem>>, %arg7: memref<1x128xf32, #tpu.memory_space<vmem>>, %arg8: memref<1x16x128xf32, #tpu.memory_space<vmem>>, %arg9: memref<24x128xbf16, #tpu.memory_space<vmem>>, %arg10: memref<20x384xbf16, #tpu.memory_space<vmem>>, %arg11: memref<20x128xbf16, #tpu.memory_space<vmem>>, %arg12: memref<16x128xf32, #tpu.memory_space<vmem>>, %arg13: memref<!tpu.dma_semaphore, #tpu.memory_space<semaphore_mem>>) attributes {dimension_semantics = [#tpu.dimension_semantics<parallel>, #tpu.dimension_semantics<parallel>, #tpu.dimension_semantics<arbitrary>], iteration_bounds = array<i64: 2, 1, 1>, scalar_prefetch = 0 : i64, scratch_operands = 5 : i64, tpu.core_type = #tpu.core_type<tc>, window_params = [{}, {transform_indices = @transform_1, window_bounds = array<i64: 384, 128>}, {transform_indices = @transform_2, window_bounds = array<i64: 1, 128>}, {transform_indices = @transform_3, window_bounds = array<i64: 3, 128, 128>}, {pipeline_mode = #tpu.pipeline_mode<synchronous>, transform_indices = @transform_4, window_bounds = array<i64: 1, 128>}, {transform_indices = @transform_5, window_bounds = array<i64: 1, 16, 128>}]} {
    %c0_i32 = arith.constant 0 : i32
    %0 = arith.cmpi eq, %arg2, %c0_i32 : i32
    %1 = arith.extui %0 : i1 to i32
    %c0_i32_0 = arith.constant 0 : i32
    %2 = arith.cmpi ne, %1, %c0_i32_0 : i32
    scf.if %2 {
      %c16_i32_36 = arith.constant 16 : i32
      %58 = arith.muli %arg1, %c16_i32_36 : i32
      %59 = tpu.assume_multiple %58, 8 : i32
      %c0_i32_37 = arith.constant 0 : i32
      %60 = tpu.memref_slice %arg3[%arg0, %59, %c0_i32_37] : memref<2x24x128xbf16, #tpu.memory_space<any>> -> memref<1x24x128xbf16, #tpu.memory_space<any>>
      %61 = tpu.memref_squeeze %60 : memref<1x24x128xbf16, #tpu.memory_space<any>> -> memref<24x128xbf16, #tpu.memory_space<any>>
      tpu.enqueue_dma source(%61 : memref<24x128xbf16, #tpu.memory_space<any>>) target(%arg9 : memref<24x128xbf16, #tpu.memory_space<vmem>>) target_semaphore(%arg13 : memref<!tpu.dma_semaphore, #tpu.memory_space<semaphore_mem>>)
      %c0_i32_38 = arith.constant 0 : i32
      %62 = tpu.memref_slice %arg3[%arg0, %59, %c0_i32_38] : memref<2x24x128xbf16, #tpu.memory_space<any>> -> memref<1x24x128xbf16, #tpu.memory_space<any>>
      %63 = tpu.memref_squeeze %62 : memref<1x24x128xbf16, #tpu.memory_space<any>> -> memref<24x128xbf16, #tpu.memory_space<any>>
      tpu.wait_dma2 semaphore(%arg13 : memref<!tpu.dma_semaphore, #tpu.memory_space<semaphore_mem>>) src(%63 : memref<24x128xbf16, #tpu.memory_space<any>>) dst(%arg9 : memref<24x128xbf16, #tpu.memory_space<vmem>>)
      %c0_39 = arith.constant 0 : index
      %c0_40 = arith.constant 0 : index
      %64 = vector.load %arg9[%c0_39, %c0_40] : memref<24x128xbf16, #tpu.memory_space<vmem>>, vector<20x128xbf16>
      %c0_41 = arith.constant 0 : index
      %c0_42 = arith.constant 0 : index
      %65 = vector.load %arg10[%c0_41, %c0_42] : memref<20x384xbf16, #tpu.memory_space<vmem>>, vector<20x128xbf16>
      tpu.vector_store %arg10[%c0_41, %c0_42], %64 {strides = array<i32>} : memref<20x384xbf16, #tpu.memory_space<vmem>>, vector<20x128xbf16>,
      %c2_43 = arith.constant 2 : index
      %c0_44 = arith.constant 0 : index
      %66 = vector.load %arg9[%c2_43, %c0_44] : memref<24x128xbf16, #tpu.memory_space<vmem>>, vector<20x128xbf16>
      %c0_45 = arith.constant 0 : index
      %c128 = arith.constant 128 : index
      %67 = vector.load %arg10[%c0_45, %c128] : memref<20x384xbf16, #tpu.memory_space<vmem>>, vector<20x128xbf16>
      tpu.vector_store %arg10[%c0_45, %c128], %66 {strides = array<i32>} : memref<20x384xbf16, #tpu.memory_space<vmem>>, vector<20x128xbf16>,
      %c4_46 = arith.constant 4 : index
      %c0_47 = arith.constant 0 : index
      %68 = vector.load %arg9[%c4_46, %c0_47] : memref<24x128xbf16, #tpu.memory_space<vmem>>, vector<20x128xbf16>
      %c0_48 = arith.constant 0 : index
      %c256 = arith.constant 256 : index
      %69 = vector.load %arg10[%c0_48, %c256] : memref<20x384xbf16, #tpu.memory_space<vmem>>, vector<20x128xbf16>
      tpu.vector_store %arg10[%c0_48, %c256], %68 {strides = array<i32>} : memref<20x384xbf16, #tpu.memory_space<vmem>>, vector<20x128xbf16>,
      %cst_49 = arith.constant 0.000000e+00 : f32
      %70 = vector.broadcast %cst_49 : f32 to vector<16x128xf32>
      %c0_50 = arith.constant 0 : index
      %c0_51 = arith.constant 0 : index
      %71 = vector.load %arg12[%c0_50, %c0_51] : memref<16x128xf32, #tpu.memory_space<vmem>>, vector<16x128xf32>
      tpu.vector_store %arg12[%c0_50, %c0_51], %70 {strides = array<i32>} : memref<16x128xf32, #tpu.memory_space<vmem>>, vector<16x128xf32>,
    } else {
    }
    %c0 = arith.constant 0 : index
    %c0_1 = arith.constant 0 : index
    %3 = vector.load %arg10[%c0, %c0_1] : memref<20x384xbf16, #tpu.memory_space<vmem>>, vector<20x384xbf16>
    %c0_2 = arith.constant 0 : index
    %c0_3 = arith.constant 0 : index
    %4 = vector.load %arg4[%c0_2, %c0_3] : memref<384x128xbf16, #tpu.memory_space<vmem>>, vector<384x128xbf16>
    %cst = arith.constant dense<0.000000e+00> : vector<20x128xf32>
    %5 = tpu.matmul %3, %4, %cst {dimension_numbers = #tpu.dot_dimension_numbers<[1], [0], [0], [1], [0, 0, 1, 1], [], []>} : vector<20x384xbf16>, vector<384x128xbf16>, vector<20x128xf32> -> vector<20x128xf32>
    %c0_4 = arith.constant 0 : index
    %c0_5 = arith.constant 0 : index
    %6 = vector.load %arg5[%c0_4, %c0_5] : memref<1x128xf32, #tpu.memory_space<vmem>>, vector<1x128xf32>
    %7 = vector.broadcast %6 : vector<1x128xf32> to vector<20x128xf32>
    %8 = arith.addf %5, %7 : vector<20x128xf32>
    %9 = tpu.iota {dimensions = array<i32: 0>} : vector<20x1xi32>
    %c16_i32 = arith.constant 16 : i32
    %10 = arith.muli %arg1, %c16_i32 : i32
    %c2_i32 = arith.constant 2 : i32
    %11 = arith.subi %10, %c2_i32 : i32
    %12 = vector.broadcast %11 : i32 to vector<20x1xi32>
    %13 = arith.addi %12, %9 : vector<20x1xi32>
    %c0_i32_6 = arith.constant 0 : i32
    %14 = vector.broadcast %c0_i32_6 : i32 to vector<20x1xi32>
    %15 = arith.cmpi sge, %13, %14 : vector<20x1xi32>
    %c16_i32_7 = arith.constant 16 : i32
    %16 = vector.broadcast %c16_i32_7 : i32 to vector<20x1xi32>
    %17 = arith.cmpi slt, %13, %16 : vector<20x1xi32>
    %18 = arith.andi %15, %17 : vector<20x1xi1>
    %cst_8 = arith.constant 5.000000e-01 : f32
    %19 = vector.broadcast %cst_8 : f32 to vector<20x128xf32>
    %20 = arith.mulf %19, %8 : vector<20x128xf32>
    %21 = arith.mulf %8, %8 : vector<20x128xf32>
    %22 = arith.mulf %21, %8 : vector<20x128xf32>
    %cst_9 = arith.constant 4.471500e-02 : f32
    %23 = vector.broadcast %cst_9 : f32 to vector<20x128xf32>
    %24 = arith.mulf %23, %22 : vector<20x128xf32>
    %25 = arith.addf %8, %24 : vector<20x128xf32>
    %cst_10 = arith.constant 0.797884583 : f32
    %26 = vector.broadcast %cst_10 : f32 to vector<20x128xf32>
    %27 = arith.mulf %26, %25 : vector<20x128xf32>
    %28 = math.tanh %27 : vector<20x128xf32>
    %cst_11 = arith.constant 1.000000e+00 : f32
    %29 = vector.broadcast %cst_11 : f32 to vector<20x128xf32>
    %30 = arith.addf %29, %28 : vector<20x128xf32>
    %31 = arith.mulf %20, %30 : vector<20x128xf32>
    %cst_12 = arith.constant 0.000000e+00 : f32
    %32 = vector.shape_cast %18 : vector<20x1xi1> to vector<20x1xi1>
    %33 = vector.broadcast %32 : vector<20x1xi1> to vector<20x128xi1>
    %34 = vector.broadcast %cst_12 : f32 to vector<20x128xf32>
    %35 = arith.select %33, %31, %34 : vector<20x128xi1>, vector<20x128xf32>
    %36 = arith.truncf %35 : vector<20x128xf32> to vector<20x128xbf16>
    %c0_13 = arith.constant 0 : index
    %c0_14 = arith.constant 0 : index
    %37 = vector.load %arg11[%c0_13, %c0_14] : memref<20x128xbf16, #tpu.memory_space<vmem>>, vector<20x128xbf16>
    tpu.vector_store %arg11[%c0_13, %c0_14], %36 {strides = array<i32>} : memref<20x128xbf16, #tpu.memory_space<vmem>>, vector<20x128xbf16>,
    %c0_15 = arith.constant 0 : index
    %c0_16 = arith.constant 0 : index
    %38 = vector.load %arg12[%c0_15, %c0_16] : memref<16x128xf32, #tpu.memory_space<vmem>>, vector<16x128xf32>
    %c0_17 = arith.constant 0 : index
    %c0_18 = arith.constant 0 : index
    %39 = vector.load %arg11[%c0_17, %c0_18] : memref<20x128xbf16, #tpu.memory_space<vmem>>, vector<16x128xbf16>
    %c0_19 = arith.constant 0 : index
    %c0_20 = arith.constant 0 : index
    %c0_21 = arith.constant 0 : index
    %40 = vector.load %arg6[%c0_19, %c0_20, %c0_21] : memref<3x128x128xbf16, #tpu.memory_space<vmem>>, vector<1x128x128xbf16>
    %41 = vector.shape_cast %40 : vector<1x128x128xbf16> to vector<128x128xbf16>
    %cst_22 = arith.constant dense<0.000000e+00> : vector<16x128xf32>
    %42 = tpu.matmul %39, %41, %cst_22 {dimension_numbers = #tpu.dot_dimension_numbers<[1], [0], [0], [1], [0, 0, 1, 1], [], []>} : vector<16x128xbf16>, vector<128x128xbf16>, vector<16x128xf32> -> vector<16x128xf32>
    %43 = arith.addf %38, %42 : vector<16x128xf32>
    %c2 = arith.constant 2 : index
    %c0_23 = arith.constant 0 : index
    %44 = vector.load %arg11[%c2, %c0_23] : memref<20x128xbf16, #tpu.memory_space<vmem>>, vector<16x128xbf16>
    %c1 = arith.constant 1 : index
    %c0_24 = arith.constant 0 : index
    %c0_25 = arith.constant 0 : index
    %45 = vector.load %arg6[%c1, %c0_24, %c0_25] : memref<3x128x128xbf16, #tpu.memory_space<vmem>>, vector<1x128x128xbf16>
    %46 = vector.shape_cast %45 : vector<1x128x128xbf16> to vector<128x128xbf16>
    %cst_26 = arith.constant dense<0.000000e+00> : vector<16x128xf32>
    %47 = tpu.matmul %44, %46, %cst_26 {dimension_numbers = #tpu.dot_dimension_numbers<[1], [0], [0], [1], [0, 0, 1, 1], [], []>} : vector<16x128xbf16>, vector<128x128xbf16>, vector<16x128xf32> -> vector<16x128xf32>
    %48 = arith.addf %43, %47 : vector<16x128xf32>
    %c4 = arith.constant 4 : index
    %c0_27 = arith.constant 0 : index
    %49 = vector.load %arg11[%c4, %c0_27] : memref<20x128xbf16, #tpu.memory_space<vmem>>, vector<16x128xbf16>
    %c2_28 = arith.constant 2 : index
    %c0_29 = arith.constant 0 : index
    %c0_30 = arith.constant 0 : index
    %50 = vector.load %arg6[%c2_28, %c0_29, %c0_30] : memref<3x128x128xbf16, #tpu.memory_space<vmem>>, vector<1x128x128xbf16>
    %51 = vector.shape_cast %50 : vector<1x128x128xbf16> to vector<128x128xbf16>
    %cst_31 = arith.constant dense<0.000000e+00> : vector<16x128xf32>
    %52 = tpu.matmul %49, %51, %cst_31 {dimension_numbers = #tpu.dot_dimension_numbers<[1], [0], [0], [1], [0, 0, 1, 1], [], []>} : vector<16x128xbf16>, vector<128x128xbf16>, vector<16x128xf32> -> vector<16x128xf32>
    %53 = arith.addf %48, %52 : vector<16x128xf32>
    %c0_32 = arith.constant 0 : index
    %c0_33 = arith.constant 0 : index
    %54 = vector.load %arg12[%c0_32, %c0_33] : memref<16x128xf32, #tpu.memory_space<vmem>>, vector<16x128xf32>
    tpu.vector_store %arg12[%c0_32, %c0_33], %53 {strides = array<i32>} : memref<16x128xf32, #tpu.memory_space<vmem>>, vector<16x128xf32>,
    %c0_i32_34 = arith.constant 0 : i32
    %55 = arith.cmpi eq, %arg2, %c0_i32_34 : i32
    %56 = arith.extui %55 : i1 to i32
    %c0_i32_35 = arith.constant 0 : i32
    %57 = arith.cmpi ne, %56, %c0_i32_35 : i32
    scf.if %57 {
      %c0_36 = arith.constant 0 : index
      %c0_37 = arith.constant 0 : index
      %58 = vector.load %arg12[%c0_36, %c0_37] : memref<16x128xf32, #tpu.memory_space<vmem>>, vector<16x128xf32>
      %c0_38 = arith.constant 0 : index
      %c0_39 = arith.constant 0 : index
      %59 = vector.load %arg7[%c0_38, %c0_39] : memref<1x128xf32, #tpu.memory_space<vmem>>, vector<1x128xf32>
      %60 = vector.broadcast %59 : vector<1x128xf32> to vector<16x128xf32>
      %61 = arith.addf %58, %60 : vector<16x128xf32>
      %c0_40 = arith.constant 0 : index
      %c0_41 = arith.constant 0 : index
      %c0_42 = arith.constant 0 : index
      %62 = vector.load %arg8[%c0_40, %c0_41, %c0_42] : memref<1x16x128xf32, #tpu.memory_space<vmem>>, vector<1x16x128xf32>
      %63 = vector.shape_cast %62 : vector<1x16x128xf32> to vector<16x128xf32>
      %64 = vector.shape_cast %61 : vector<16x128xf32> to vector<1x16x128xf32>
      tpu.vector_store %arg8[%c0_40, %c0_41, %c0_42], %64 {strides = array<i32>} : memref<1x16x128xf32, #tpu.memory_space<vmem>>, vector<1x16x128xf32>,
    } else {
    }
    return
  }
  func.func @transform_1(%arg0: i32, %arg1: i32, %arg2: i32) -> (i32, i32) {
    %c0_i32 = arith.constant 0 : i32
    %c0_i32_0 = arith.constant 0 : i32
    return %c0_i32, %arg2 : i32, i32
  }
  func.func @transform_2(%arg0: i32, %arg1: i32, %arg2: i32) -> (i32, i32) {
    %c0_i32 = arith.constant 0 : i32
    %c0_i32_0 = arith.constant 0 : i32
    return %c0_i32, %arg2 : i32, i32
  }
  func.func @transform_3(%arg0: i32, %arg1: i32, %arg2: i32) -> (i32, i32, i32) {
    %c0_i32 = arith.constant 0 : i32
    %c0_i32_0 = arith.constant 0 : i32
    %c0_i32_1 = arith.constant 0 : i32
    return %c0_i32, %arg2, %c0_i32_0 : i32, i32, i32
  }
  func.func @transform_4(%arg0: i32, %arg1: i32, %arg2: i32) -> (i32, i32) {
    %c0_i32 = arith.constant 0 : i32
    %c0_i32_0 = arith.constant 0 : i32
    %c0_i32_1 = arith.constant 0 : i32
    return %c0_i32, %c0_i32_0 : i32, i32
  }
  func.func @transform_5(%arg0: i32, %arg1: i32, %arg2: i32) -> (i32, i32, i32) {
    %c0_i32 = arith.constant 0 : i32
    %c0_i32_0 = arith.constant 0 : i32
    return %arg0, %arg1, %c0_i32 : i32, i32, i32
  }
}

</mosaic_0001>

<llo_original>
// kernel: tpu_custom_call.1
$region0: #{tpu_custom_call.1}
  #allocation0 [shape = 'u32[]', space=smem, size = 0x4, offset = 0x4, fixed_abs, tag = 'smem constant byte address 0x4 - core index']
  #allocation1 [shape = 'u32[144,128]{1,0:T(1,128)}', space=vmem, size = 0x12000, scoped, tag = 'internal scratch']
  #allocation2 [shape = 'bf16[24,128]{1,0:T(8,128)(2,1)}', space=vmem, size = 0x1800, scoped, tag = 'scratch operand']
  #allocation3 [shape = 'bf16[20,384]{1,0:T(8,128)(2,1)}', space=vmem, size = 0x4800, scoped, tag = 'scratch operand']
  #allocation4 [shape = 'bf16[20,128]{1,0:T(8,128)(2,1)}', space=vmem, size = 0x1800, scoped, tag = 'scratch operand']
  #allocation5 [shape = 'f32[16,128]{1,0:T(8,128)}', space=vmem, size = 0x2000, scoped, tag = 'scratch operand']
  #allocation6 [shape = 's32[1]{0}', space=sflag, size = 0x4, scoped, tag = 'scratch operand']
  #allocation13 [shape = 's32[]', space=sflag, size = 0x4, offset = 0, fixed_abs, tag = 'sflag constant byte address 0x0 - dummy sync flag']
  #allocation14 [shape = 's32[]', space=sflag, size = 0x4, offset = 0, fixed_abs, tag = 'sflag constant byte address 0x0 - dummy sync flag']
  #allocation15 [shape = 'u32[]', space=smem, size = 0x4, offset = 0x44, fixed_abs, tag = 'smem constant byte address 0x44 - assertion arg 0']
  #allocation16 [shape = 'u32[]', space=smem, size = 0x4, offset = 0x48, fixed_abs, tag = 'smem constant byte address 0x48 - assertion arg 1']
  %s0 = inlined_call_operand.hbm [shape: bf16[2,24,128], index: 0, kind: input, shape index: {}]
  %s1 = inlined_call_operand.hbm [shape: bf16[384,128], index: 1, kind: input, shape index: {}]
  %s2 = inlined_call_operand.vmem [shape: f32[1,128], index: 2, kind: input, shape index: {}]
  %s3 = inlined_call_operand.hbm [shape: bf16[3,128,128], index: 3, kind: input, shape index: {}]
  %s4 = inlined_call_operand.vmem [shape: f32[1,128], index: 4, kind: input, shape index: {}]
  %s5 = inlined_call_operand.hbm [shape: f32[2,16,128], index: 5, kind: output, shape index: {}]
  %s6 = sld [smem:[#allocation0]]
  $region69: #{tpu_custom_call.1} parent=0
    _
  %s8 = ssub.s32 1, %s6
  %s9 = scalar_select 0, %s8, %s6
  $region1: #{tpu_custom_call.1} parent=0
    #allocation7 [shape = 'u8[98304]{0}', space=vmem, size = 0x18000, scoped, tag = 'input window, operand 1, single buffered']
    #allocation8 [shape = 's32[2]{0}', space=sflag, size = 0x8, scoped, tag = 'scoped memory for tpu_custom_call.1']
    #allocation9 [shape = 's32[2]{0}', space=sflag, size = 0x8, scoped, tag = 'scoped memory for tpu_custom_call.1']
    #allocation10 [shape = 'u8[98304]{0}', space=vmem, size = 0x18000, scoped, tag = 'input window, operand 3, single buffered']
    #allocation11 [shape = 's32[1]{0}', space=sflag, size = 0x4, scoped, tag = 'scoped memory for tpu_custom_call.1']
    #allocation12 [shape = 'u8[16384]{0}', space=vmem, size = 0x4000, scoped, tag = 'output window, operand 0']
    %10 = vsyncpa [#allocation8], 0
    %11 = vsyncpa [#allocation11], 0
    %12 = vsyncpa [#allocation9], 0
    %s13 = scalar_lea.sflag [#allocation9], 1
    %14 = vsyncpa %s13, 0
    loop: start=0, step=1, limit=4
    $region2: #{tpu_custom_call.1} parent=1 // loop_pre_header
      _
    $region3: #{tpu_custom_call.1} parent=1 // loop_header
      %s16 = sphi 0, %s20
      %p17 = scmp.ge.s32.totalorder %s16, 4
      %s23 = sphi 0, %s42
      %s24 = sphi 0, %s38
      %s25 = sphi 0, %s34
      %s26 = sphi 0, %s23
      %s27 = sphi 0, %s24
      %s28 = sphi 0, %s25
      %s29 = sphi 0, %s26
      %s30 = sphi 0, %s27
      %s31 = sphi 0, %s28
      %s45 = sphi 0, %s47
      %s48 = sphi 0, %s45
      %s49 = sphi 0, %s48
      %s65 = sphi 0, %s49
      %s71 = sphi 0, %s73
      %s74 = sphi 0, %s71
      %s75 = sphi 0, %s74
      %s91 = sphi 0, %s75
      %s97 = sphi 0, %s99
      %s100 = sphi 0, %s97
      %s101 = sphi 0, %s100
      %s117 = sphi 0, %s101
      %s121 = sphi 0, %s121
      %s123 = sphi 0, %s121
      %s124 = sphi 0, %s123
      %s138 = sphi 0, %s124
      %s146 = sphi 0, %s148
      %s149 = sphi 0, %s146
      %s150 = sphi 0, %s149
      %s166 = sphi 0, %s150
    $region4: #{tpu_custom_call.1} parent=1 // loop_header_branch
      %19 = sbr.rel (%p17) target = $region8
    $region5: #{tpu_custom_call.1} parent=1 // loop_body
      %s21 = ssub.s32 %s16, 1
      %s22 = ssub.s32 %s16, 2
      %s32 = sadd.s32 1, %s25
      %p33 = scmp.ge.s32.totalorder %s32, 1
      %s34 = scalar_select %p33, 0, %s32
      %s35 = sadd.s32 1, %s24
      %s36 = scalar_select %p33, %s35, %s24
      %p37 = scmp.ge.s32.totalorder %s36, 1
      %s38 = scalar_select %p37, 0, %s36
      %s39 = sadd.s32 1, %s23
      %s40 = scalar_select %p37, %s39, %s23
      %p41 = scmp.ge.s32.totalorder %s40, 2
      %s42 = scalar_select %p41, 0, %s40
      %s43 = ssub.s32 %s25, %s34
      %p44 = scmp.eq.s32.totalorder %s43, 0
      %s46 = sadd.s32 %s45, 1
      %s47 = scalar_select %p44, %s45, %s46
      %p50 = pneg %p44
      %p51 = scmp.eq.s32.totalorder %s16, 1
      %p52 = por %p50, %p51
      %p53 = scmp.ne.s32.totalorder %s45, %s48
      %p54 = scmp.eq.s32.totalorder %s16, 0
      %p55 = por %p53, %p54
      %p56 = scmp.ne.s32.totalorder %s45, %s48
      %p57 = scmp.eq.s32.totalorder %s21, 1
      %p58 = por %p56, %p57
      %p59 = scmp.ne.s32.totalorder %s48, %s49
      %p60 = scmp.eq.s32.totalorder %s21, 0
      %p61 = por %p59, %p60
      %p62 = scmp.ne.s32.totalorder %s48, %s49
      %p63 = scmp.eq.s32.totalorder %s22, 1
      %p64 = por %p62, %p63
      %p66 = scmp.ne.s32.totalorder %s49, %s65
      %p67 = scmp.eq.s32.totalorder %s22, 0
      %p68 = por %p66, %p67
      %s69 = ssub.s32 %s25, %s34
      %p70 = scmp.eq.s32.totalorder %s69, 0
      %s72 = sadd.s32 %s71, 1
      %s73 = scalar_select %p70, %s71, %s72
      %p76 = pneg %p70
      %p77 = scmp.eq.s32.totalorder %s16, 1
      %p78 = por %p76, %p77
      %p79 = scmp.ne.s32.totalorder %s71, %s74
      %p80 = scmp.eq.s32.totalorder %s16, 0
      %p81 = por %p79, %p80
      %p82 = scmp.ne.s32.totalorder %s71, %s74
      %p83 = scmp.eq.s32.totalorder %s21, 1
      %p84 = por %p82, %p83
      %p85 = scmp.ne.s32.totalorder %s74, %s75
      %p86 = scmp.eq.s32.totalorder %s21, 0
      %p87 = por %p85, %p86
      %p88 = scmp.ne.s32.totalorder %s74, %s75
      %p89 = scmp.eq.s32.totalorder %s22, 1
      %p90 = por %p88, %p89
      %p92 = scmp.ne.s32.totalorder %s75, %s91
      %p93 = scmp.eq.s32.totalorder %s22, 0
      %p94 = por %p92, %p93
      %s95 = ssub.s32 %s25, %s34
      %p96 = scmp.eq.s32.totalorder %s95, 0
      %s98 = sadd.s32 %s97, 1
      %s99 = scalar_select %p96, %s97, %s98
      %p102 = pneg %p96
      %p103 = scmp.eq.s32.totalorder %s16, 1
      %p104 = por %p102, %p103
      %p105 = scmp.ne.s32.totalorder %s97, %s100
      %p106 = scmp.eq.s32.totalorder %s16, 0
      %p107 = por %p105, %p106
      %p108 = scmp.ne.s32.totalorder %s97, %s100
      %p109 = scmp.eq.s32.totalorder %s21, 1
      %p110 = por %p108, %p109
      %p111 = scmp.ne.s32.totalorder %s100, %s101
      %p112 = scmp.eq.s32.totalorder %s21, 0
      %p113 = por %p111, %p112
      %p114 = scmp.ne.s32.totalorder %s100, %s101
      %p115 = scmp.eq.s32.totalorder %s22, 1
      %p116 = por %p114, %p115
      %p118 = scmp.ne.s32.totalorder %s101, %s117
      %p119 = scmp.eq.s32.totalorder %s22, 0
      %p120 = por %p118, %p119
      %s122 = sadd.s32 %s121, 1
      %p125 = scmp.eq.s32.totalorder %s16, 1
      %p126 = scmp.ne.s32.totalorder %s121, %s123
      %p127 = scmp.eq.s32.totalorder %s16, 0
      %p128 = por %p126, %p127
      %p129 = scmp.ne.s32.totalorder %s121, %s123
      %p130 = scmp.eq.s32.totalorder %s21, 1
      %p131 = por %p129, %p130
      %p132 = scmp.ne.s32.totalorder %s123, %s124
      %p133 = scmp.eq.s32.totalorder %s21, 0
      %p134 = por %p132, %p133
      %p135 = scmp.ne.s32.totalorder %s123, %s124
      %p136 = scmp.eq.s32.totalorder %s22, 1
      %p137 = por %p135, %p136
      %p139 = scmp.ne.s32.totalorder %s124, %s138
      %p140 = scmp.eq.s32.totalorder %s22, 0
      %p141 = por %p139, %p140
      %s142 = ssub.s32 %s23, %s42
      %s143 = ssub.s32 %s24, %s38
      %s144 = sor.u32 %s142, %s143
      %p145 = scmp.eq.s32.totalorder %s144, 0
      %s147 = sadd.s32 %s146, 1
      %s148 = scalar_select %p145, %s146, %s147
      %p151 = pneg %p145
      %p152 = scmp.eq.s32.totalorder %s16, 1
      %p153 = por %p151, %p152
      %p154 = scmp.ne.s32.totalorder %s146, %s149
      %p155 = scmp.eq.s32.totalorder %s16, 0
      %p156 = por %p154, %p155
      %p157 = scmp.ne.s32.totalorder %s146, %s149
      %p158 = scmp.eq.s32.totalorder %s21, 1
      %p159 = por %p157, %p158
      %p160 = scmp.ne.s32.totalorder %s149, %s150
      %p161 = scmp.eq.s32.totalorder %s21, 0
      %p162 = por %p160, %p161
      %p163 = scmp.ne.s32.totalorder %s149, %s150
      %p164 = scmp.eq.s32.totalorder %s22, 1
      %p165 = por %p163, %p164
      %p167 = scmp.ne.s32.totalorder %s150, %s166
      %p168 = scmp.eq.s32.totalorder %s22, 0
      %p169 = por %p167, %p168
      %p170 = scmp.le.s32.totalorder 1, %s16
      %p171 = scmp.lt.s32.totalorder %s16, 3
      %p172 = pnand %p170, %p171
      %p173 = pneg %p172
      // Predicated region
      $region9: #{tpu_custom_call.1} parent=5 // pred_check
        _
      $region10: #{tpu_custom_call.1} parent=5 // pred_check_branch
        %175 = sbr.rel (%p172) target = $region12
      $region11: #{tpu_custom_call.1} parent=5 // pred_region
        %s176 = ssub.s32 %s16, 1
        // Predicated region
        $region13: #{tpu_custom_call.1} parent=11 // pred_check
          %p177 = pneg %p61
        $region14: #{tpu_custom_call.1} parent=11 // pred_check_branch
          %179 = sbr.rel (%p177) target = $region16
        $region15: #{tpu_custom_call.1} parent=11 // pred_region
          %s181 = ssub.s32 3072, 3072
          %182 = vsyncadd [#allocation8], %s181
          %s183 = smul.addr %s28, 64
          %s184 = scalar_lea.hbm %s1, %s183
          %s185 = sshll.u32 [#allocation7], 4
          %s186 = int_to_ptr.vmem [resolvable:$true] %s185
          %191 = dma.hbm_to_vmem [thread:$0]  %s184, 3072, %s186, [#allocation8], 64, 64, 4
        $region16: #{tpu_custom_call.1} parent=11 // pred_fallthru
          _
        // Predicated region
        $region17: #{tpu_custom_call.1} parent=11 // pred_check
          %p192 = pneg %p87
        $region18: #{tpu_custom_call.1} parent=11 // pred_check_branch
          %194 = sbr.rel (%p192) target = $region20
        $region19: #{tpu_custom_call.1} parent=11 // pred_region
          %p195 = scmp.lt.s32.totalorder %s28, 0
          %s196 = scalar_select %p195, %s28, 0
          %s197 = scalar_lea.vmem %s2, %s196
        $region20: #{tpu_custom_call.1} parent=11 // pred_fallthru
          _
        // Predicated region
        $region21: #{tpu_custom_call.1} parent=11 // pred_check
          %p198 = pneg %p113
        $region22: #{tpu_custom_call.1} parent=11 // pred_check_branch
          %200 = sbr.rel (%p198) target = $region24
        $region23: #{tpu_custom_call.1} parent=11 // pred_region
          %s201 = smul.u32 16, %s28
          %s203 = ssub.s32 3072, 3072
          %204 = vsyncadd [#allocation11], %s203
          %s205 = smul.addr %s201, 64
          %s206 = scalar_lea.hbm %s3, %s205
          %s207 = sshll.u32 [#allocation10], 4
          %s208 = int_to_ptr.vmem [resolvable:$true] %s207
          %213 = dma.hbm_to_vmem [thread:$0]  %s206, 3072, %s208, [#allocation11], 64, 64, 4
        $region24: #{tpu_custom_call.1} parent=11 // pred_fallthru
          _
        // Predicated region
        $region25: #{tpu_custom_call.1} parent=11 // pred_check
          %p214 = pneg %p134
        $region26: #{tpu_custom_call.1} parent=11 // pred_check_branch
          %216 = sbr.rel (%p214) target = $region28
        $region27: #{tpu_custom_call.1} parent=11 // pred_region
          _
        $region28: #{tpu_custom_call.1} parent=11 // pred_fallthru
          _
      $region12: #{tpu_custom_call.1} parent=5 // pred_fallthru
        _
      %p217 = scmp.lt.s32.totalorder %s16, 2
      // Predicated region
      $region29: #{tpu_custom_call.1} parent=5 // pred_check
        %p218 = pneg %p217
      $region30: #{tpu_custom_call.1} parent=5 // pred_check_branch
        %220 = sbr.rel (%p218) target = $region32
      $region31: #{tpu_custom_call.1} parent=5 // pred_region
        _
      $region32: #{tpu_custom_call.1} parent=5 // pred_fallthru
        _
      %p221 = scmp.le.s32.totalorder 1, %s16
      %p222 = scmp.lt.s32.totalorder %s16, 3
      %p223 = pnand %p221, %p222
      %p224 = pneg %p223
      // Predicated region
      $region33: #{tpu_custom_call.1} parent=5 // pred_check
        _
      $region34: #{tpu_custom_call.1} parent=5 // pred_check_branch
        %226 = sbr.rel (%p223) target = $region36
      $region35: #{tpu_custom_call.1} parent=5 // pred_region
        %s227 = ssub.s32 %s16, 1
        // Predicated region
        $region37: #{tpu_custom_call.1} parent=35 // pred_check
          %p228 = pneg %p61
        $region38: #{tpu_custom_call.1} parent=35 // pred_check_branch
          %230 = sbr.rel (%p228) target = $region40
        $region39: #{tpu_custom_call.1} parent=35 // pred_region
          %231 = dma.done [#allocation8], 3072
        $region40: #{tpu_custom_call.1} parent=35 // pred_fallthru
          _
        // Predicated region
        $region41: #{tpu_custom_call.1} parent=35 // pred_check
          %p232 = pneg %p113
        $region42: #{tpu_custom_call.1} parent=35 // pred_check_branch
          %234 = sbr.rel (%p232) target = $region44
        $region43: #{tpu_custom_call.1} parent=35 // pred_region
          %235 = dma.done [#allocation11], 3072
        $region44: #{tpu_custom_call.1} parent=35 // pred_fallthru
          _
        %p236 = pneg %p61
        %p237 = pneg %p58
        %p238 = scmp.lt.s32.totalorder %s28, 0
        %s239 = scalar_select %p238, %s28, 0
        %s240 = scalar_lea.vmem %s2, %s239
        %p241 = pneg %p87
        %p242 = pneg %p84
        %p243 = pneg %p113
        %p244 = pneg %p110
        %p245 = pneg %p134
        %p246 = pneg %p131
        %p247 = pneg %p162
        %p248 = pneg %p159
        %s249 = sand.u32 %s149, 1
        %s250 = scalar_lea.sflag [#allocation9], %s249
        %s251 = sand.u32 %s149, 1
        %s252 = smul.addr %s251, 16
        %s253 = scalar_lea.vmem [#allocation12], %s252
        %p254 = scmp.lt.s32.totalorder %s28, 0
        %s255 = scalar_select %p254, %s28, 0
        %s256 = scalar_lea.vmem %s2, %s255
        %s257 = smul.u32 16, %s28
        %s258 = smul.u32 2, %s27
        %p260 = scmp.eq.s32.totalorder %s28, 0
        // Predicated region
        $region45: #{tpu_custom_call.1} parent=35 // pred_check
          %p261 = pneg %p260
        $region46: #{tpu_custom_call.1} parent=35 // pred_check_branch
          %263 = sbr.rel (%p261) target = $region48
        $region47: #{tpu_custom_call.1} parent=35 // pred_region
          %s264 = smul.u32 %s27, 16
          %s265 = sshra.s32 %s264, 3
          %s266 = sand.u32 %s264, 7
          %s267 = smul.u32 %s26, 3
          %s268 = sadd.s32 %s265, %s267
          %s269 = smul.addr %s268, 64
          %s270 = scalar_lea.hbm %s0, %s269
          // Predicated region
          $region49: #{tpu_custom_call.1} parent=47 // pred_check
            _
          $region50: #{tpu_custom_call.1} parent=47 // pred_check_branch
            %272 = sbr.rel target = $region52
          $region51: #{tpu_custom_call.1} parent=47 // pred_region
            %273 = sst [smem:[#allocation15]] [#allocation14]
            %274 = sst [smem:[#allocation16]] [#allocation13]
          $region52: #{tpu_custom_call.1} parent=47 // pred_fallthru
            _
          %276 = shalt.err (0)
          %s278 = sshll.u32 [#allocation2], 4
          %s279 = int_to_ptr.vmem [resolvable:$true] %s278
          %281 = dma.hbm_to_vmem [thread:$0]  %s270, 192, %s279, [#allocation6]
          %s282 = smul.u32 4, 3
          %s283 = smul.u32 %s282, 1
          %s284 = sshll.u32 %s283, 4
          %285 = dma.done [#allocation6], %s284
          %v286 = vld [vmem:[#allocation2] sm:$0xf]
          %v287 = vld [vmem:[#allocation2 + $0x4] sm:$0xf]
          %v288 = vld [vmem:[#allocation2 + $0x8] sm:$0x3]
          %289 = vst [vmem:[#allocation3] sm:$0xf] %v286
          %290 = vst [vmem:[#allocation3 + $0xc] sm:$0xf] %v287
          %291 = vst [vmem:[#allocation3 + $0x18] sm:$0x3] %v288
          %v292 = vld [vmem:[#allocation2] sm:$0xe]
          %v293 = vld [vmem:[#allocation2 + $0x4] sm:$0xf]
          %v294 = vld [vmem:[#allocation2 + $0x8] sm:$0x7]
          %vm298 = vcmask 1042432
          %vm299 = vcmask 1046532
          %vm300 = vmor %vm298, %vm299
          %v301 = vrot.slane %v292, 5
          %v302 = vrot.slane %v301, 4
          %v303 = vrot.slane %v293, 5
          %v304 = vsel %vm300, %v302, %v303
          %v305 = vrot.slane %v303, 4
          %v306 = vrot.slane %v294, 5
          %v307 = vsel %vm300, %v305, %v306
          %v308 = vrot.slane %v306, 4
          %312 = vst [vmem:[#allocation3 + $0x4] sm:$0xf] %v304
          %313 = vst [vmem:[#allocation3 + $0x10] sm:$0xf] %v307
          %314 = vst [vmem:[#allocation3 + $0x1c] sm:$0x3] %v308
          %v315 = vld [vmem:[#allocation2] sm:$0xc]
          %v316 = vld [vmem:[#allocation2 + $0x4] sm:$0xf]
          %v317 = vld [vmem:[#allocation2 + $0x8] sm:$0xf]
          %vm321 = vcmask 1041408
          %vm322 = vcmask 1045508
          %vm323 = vmor %vm321, %vm322
          %v324 = vrot.slane %v315, 6
          %v325 = vrot.slane %v324, 4
          %v326 = vrot.slane %v316, 6
          %v327 = vsel %vm323, %v325, %v326
          %v328 = vrot.slane %v326, 4
          %v329 = vrot.slane %v317, 6
          %v330 = vsel %vm323, %v328, %v329
          %v331 = vrot.slane %v329, 4
          %335 = vst [vmem:[#allocation3 + $0x8] sm:$0xf] %v327
          %336 = vst [vmem:[#allocation3 + $0x14] sm:$0xf] %v330
          %337 = vst [vmem:[#allocation3 + $0x20] sm:$0x3] %v331
          %338 = vst [vmem:[#allocation5] sm:$0xff] 0.0
          %339 = vst [vmem:[#allocation5 + $0x8] sm:$0xff] 0.0
        $region48: #{tpu_custom_call.1} parent=35 // pred_fallthru
          _
        %v340 = vld [vmem:[#allocation3] sm:$0xff]
        %v341 = vld [vmem:[#allocation3 + $0x8] sm:$0xf]
        %v342 = vld [vmem:[#allocation3 + $0xc] sm:$0xff]
        %v343 = vld [vmem:[#allocation3 + $0x14] sm:$0xf]
        %v344 = vld [vmem:[#allocation3 + $0x18] sm:$0x33]
        %v345 = vld [vmem:[#allocation3 + $0x20] sm:$0x3]
        %v346 = vld [vmem:[#allocation7] sm:$0xf]
        %v347 = vld [vmem:[#allocation7 + $0x4] sm:$0xf]
        %v348 = vld [vmem:[#allocation7 + $0x8] sm:$0xf]
        %v349 = vld [vmem:[#allocation7 + $0xc] sm:$0xf]
        %v350 = vld [vmem:[#allocation7 + $0x10] sm:$0xf]
        %v351 = vld [vmem:[#allocation7 + $0x14] sm:$0xf]
        %v352 = vld [vmem:[#allocation7 + $0x18] sm:$0xf]
        %v353 = vld [vmem:[#allocation7 + $0x1c] sm:$0xf]
        %v354 = vld [vmem:[#allocation7 + $0x20] sm:$0xf]
        %v355 = vld [vmem:[#allocation7 + $0x24] sm:$0xf]
        %v356 = vld [vmem:[#allocation7 + $0x28] sm:$0xf]
        %v357 = vld [vmem:[#allocation7 + $0x2c] sm:$0xf]
        %v358 = vld [vmem:[#allocation7 + $0x30] sm:$0xf]
        %v359 = vld [vmem:[#allocation7 + $0x34] sm:$0xf]
        %v360 = vld [vmem:[#allocation7 + $0x38] sm:$0xf]
        %v361 = vld [vmem:[#allocation7 + $0x3c] sm:$0xf]
        %v362 = vld [vmem:[#allocation7 + $0x40] sm:$0xf]
        %v363 = vld [vmem:[#allocation7 + $0x44] sm:$0xf]
        %v364 = vld [vmem:[#allocation7 + $0x48] sm:$0xf]
        %v365 = vld [vmem:[#allocation7 + $0x4c] sm:$0xf]
        %v366 = vld [vmem:[#allocation7 + $0x50] sm:$0xf]
        %v367 = vld [vmem:[#allocation7 + $0x54] sm:$0xf]
        %v368 = vld [vmem:[#allocation7 + $0x58] sm:$0xf]
        %v369 = vld [vmem:[#allocation7 + $0x5c] sm:$0xf]
        %v370 = vld [vmem:[#allocation7 + $0x60] sm:$0xf]
        %v371 = vld [vmem:[#allocation7 + $0x64] sm:$0xf]
        %v372 = vld [vmem:[#allocation7 + $0x68] sm:$0xf]
        %v373 = vld [vmem:[#allocation7 + $0x6c] sm:$0xf]
        %v374 = vld [vmem:[#allocation7 + $0x70] sm:$0xf]
        %v375 = vld [vmem:[#allocation7 + $0x74] sm:$0xf]
        %v376 = vld [vmem:[#allocation7 + $0x78] sm:$0xf]
        %v377 = vld [vmem:[#allocation7 + $0x7c] sm:$0xf]
        %v378 = vld [vmem:[#allocation7 + $0x80] sm:$0xf]
        %v379 = vld [vmem:[#allocation7 + $0x84] sm:$0xf]
        %v380 = vld [vmem:[#allocation7 + $0x88] sm:$0xf]
        %v381 = vld [vmem:[#allocation7 + $0x8c] sm:$0xf]
        %v382 = vld [vmem:[#allocation7 + $0x90] sm:$0xf]
        %v383 = vld [vmem:[#allocation7 + $0x94] sm:$0xf]
        %v384 = vld [vmem:[#allocation7 + $0x98] sm:$0xf]
        %v385 = vld [vmem:[#allocation7 + $0x9c] sm:$0xf]
        %v386 = vld [vmem:[#allocation7 + $0xa0] sm:$0xf]
        %v387 = vld [vmem:[#allocation7 + $0xa4] sm:$0xf]
        %v388 = vld [vmem:[#allocation7 + $0xa8] sm:$0xf]
        %v389 = vld [vmem:[#allocation7 + $0xac] sm:$0xf]
        %v390 = vld [vmem:[#allocation7 + $0xb0] sm:$0xf]
        %v391 = vld [vmem:[#allocation7 + $0xb4] sm:$0xf]
        %v392 = vld [vmem:[#allocation7 + $0xb8] sm:$0xf]
        %v393 = vld [vmem:[#allocation7 + $0xbc] sm:$0xf]
        %v394 = vld [vmem:[%s256] sm:$0x1]
        %v396 = vlaneseq
        %v397 = vshrl.u32 %v396, 7
        %v398 = vsub.s32 0, %v397
        %v399 = vrot.slane %v394, %v398
        %v407 = vunpack.c.l.b16 %v340
        %v408 = vunpack.c.h.b16 %v340
        %v409 = vunpack.c.l.b16 %v341
        %v410 = vunpack.c.l.b16 %v342
        %v411 = vunpack.c.h.b16 %v342
        %v412 = vunpack.c.l.b16 %v343
        %v413 = vunpack.c.l.b16 %v344
        %v414 = vunpack.c.h.b16 %v344
        %v415 = vunpack.c.l.b16 %v345
        %v416 = vpack.c.b16 %v410, %v407
        %v417 = vpack.c.b16 %v411, %v408
        %v418 = vpack.c.b16 %v412, %v409
        %v419 = vpack.c.b16 %v413, %v413
        %v420 = vpack.c.b16 %v414, %v414
        %v421 = vpack.c.b16 %v415, %v415
        %v476 = vunpack.c.l.b16 %v346
        %v477 = vunpack.c.l.b16 %v347
        %v478 = vunpack.c.l.b16 %v348
        %v479 = vunpack.c.l.b16 %v349
        %v480 = vunpack.c.l.b16 %v350
        %v481 = vunpack.c.l.b16 %v351
        %v482 = vunpack.c.l.b16 %v352
        %v483 = vunpack.c.l.b16 %v353
        %v484 = vunpack.c.l.b16 %v354
        %v485 = vunpack.c.l.b16 %v355
        %v486 = vunpack.c.l.b16 %v356
        %v487 = vunpack.c.l.b16 %v357
        %v488 = vunpack.c.l.b16 %v358
        %v489 = vunpack.c.l.b16 %v359
        %v490 = vunpack.c.l.b16 %v360
        %v491 = vunpack.c.l.b16 %v361
        %v492 = vunpack.c.l.b16 %v362
        %v493 = vunpack.c.l.b16 %v363
        %v494 = vunpack.c.l.b16 %v364
        %v495 = vunpack.c.l.b16 %v365
        %v496 = vunpack.c.l.b16 %v366
        %v497 = vunpack.c.l.b16 %v367
        %v498 = vunpack.c.l.b16 %v368
        %v499 = vunpack.c.l.b16 %v369
        %v500 = vunpack.c.l.b16 %v370
        %v501 = vunpack.c.l.b16 %v371
        %v502 = vunpack.c.l.b16 %v372
        %v503 = vunpack.c.l.b16 %v373
        %v504 = vunpack.c.l.b16 %v374
        %v505 = vunpack.c.l.b16 %v375
        %v506 = vunpack.c.l.b16 %v376
        %v507 = vunpack.c.l.b16 %v377
        %v508 = vunpack.c.l.b16 %v378
        %v509 = vunpack.c.l.b16 %v379
        %v510 = vunpack.c.l.b16 %v380
        %v511 = vunpack.c.l.b16 %v381
        %v512 = vunpack.c.l.b16 %v382
        %v513 = vunpack.c.l.b16 %v383
        %v514 = vunpack.c.l.b16 %v384
        %v515 = vunpack.c.l.b16 %v385
        %v516 = vunpack.c.l.b16 %v386
        %v517 = vunpack.c.l.b16 %v387
        %v518 = vunpack.c.l.b16 %v388
        %v519 = vunpack.c.l.b16 %v389
        %v520 = vunpack.c.l.b16 %v390
        %v521 = vunpack.c.l.b16 %v391
        %v522 = vunpack.c.l.b16 %v392
        %v523 = vunpack.c.l.b16 %v393
        %v524 = vpack.c.b16 %v477, %v476
        %v525 = vpack.c.b16 %v479, %v478
        %v526 = vpack.c.b16 %v481, %v480
        %v527 = vpack.c.b16 %v483, %v482
        %v528 = vpack.c.b16 %v485, %v484
        %v529 = vpack.c.b16 %v487, %v486
        %v530 = vpack.c.b16 %v489, %v488
        %v531 = vpack.c.b16 %v491, %v490
        %v532 = vpack.c.b16 %v493, %v492
        %v533 = vpack.c.b16 %v495, %v494
        %v534 = vpack.c.b16 %v497, %v496
        %v535 = vpack.c.b16 %v499, %v498
        %v536 = vpack.c.b16 %v501, %v500
        %v537 = vpack.c.b16 %v503, %v502
        %v538 = vpack.c.b16 %v505, %v504
        %v539 = vpack.c.b16 %v507, %v506
        %v540 = vpack.c.b16 %v509, %v508
        %v541 = vpack.c.b16 %v511, %v510
        %v542 = vpack.c.b16 %v513, %v512
        %v543 = vpack.c.b16 %v515, %v514
        %v544 = vpack.c.b16 %v517, %v516
        %v545 = vpack.c.b16 %v519, %v518
        %v546 = vpack.c.b16 %v521, %v520
        %v547 = vpack.c.b16 %v523, %v522
        %572 = vmatprep.subr.bf16.mxu0 0
        %573 = vmatpush1.bf16.msra.mxu0 %v524
        %574 = vmatprep.subr.bf16.mxu0 0
        %575 = vmatpush1.bf16.msra.mxu0 %v525
        %576 = vmatprep.subr.bf16.mxu0 0
        %577 = vmatpush1.bf16.msra.mxu0 %v526
        %578 = vmatprep.subr.bf16.mxu0 0
        %579 = vmatpush1.bf16.msra.mxu0 %v527
        %580 = vmatprep.subr.bf16.mxu0 0
        %581 = vmatpush1.bf16.msra.mxu0 %v528
        %582 = vmatprep.subr.bf16.mxu0 0
        %583 = vmatpush1.bf16.msra.mxu0 %v529
        %584 = vmatprep.subr.bf16.mxu0 0
        %585 = vmatpush1.bf16.msra.mxu0 %v530
        %586 = vmatprep.subr.bf16.mxu0 0
        %587 = vmatpush1.bf16.msra.mxu0 %v531
        %588 = vmatprep.subr.bf16.mxu0 0
        %589 = vmatpush1.bf16.msra.mxu0 %v532
        %590 = vmatprep.subr.bf16.mxu0 0
        %591 = vmatpush1.bf16.msra.mxu0 %v533
        %592 = vmatprep.subr.bf16.mxu0 0
        %593 = vmatpush1.bf16.msra.mxu0 %v534
        %594 = vmatprep.subr.bf16.mxu0 0
        %595 = vmatpush1.bf16.msra.mxu0 %v535
        %596 = vmatprep.subr.bf16.mxu0 0
        %597 = vmatpush1.bf16.msra.mxu0 %v536
        %598 = vmatprep.subr.bf16.mxu0 0
        %599 = vmatpush1.bf16.msra.mxu0 %v537
        %600 = vmatprep.subr.bf16.mxu0 0
        %601 = vmatpush1.bf16.msra.mxu0 %v538
        %602 = vmatprep.subr.bf16.mxu0 0
        %603 = vmatpush1.bf16.msra.mxu0 %v539
        %604 = vmatprep.mubr.bf16.mxu0 %v417
        %605 = vmatmul.mubr.bf16.gmra.mrb[0].mxu0 %v416
        %v606 = vpop.f32.mrb[0].mxu0
        %v607 = vadd.f32 %v399, %v606
        %v608 = vpop.f32.mrb[0].mxu0
        %v609 = vpop.f32.mrb[0].mxu0
        %v610 = vadd.f32 %v399, %v609
        %v611 = vpop.f32.mrb[0].mxu0
        %612 = vmatprep.mubr.bf16.mxu0 %v420
        %613 = vmatmul.mubr.bf16.gmra.mrb[0].mxu0 %v419
        %v614 = vpop.f32.mrb[0].mxu0
        %v615 = vadd.f32 %v399, %v614
        %v616 = vpop.f32.mrb[0].mxu0
        %v617 = vpop.f32.mrb[0].mxu0
        %v618 = vpop.f32.mrb[0].mxu0
        %619 = vdwg.mxu0
        %620 = vmatprep.subr.bf16.mxu0 0
        %621 = vmatpush1.bf16.msra.mxu0 %v540
        %622 = vmatprep.subr.bf16.mxu0 0
        %623 = vmatpush1.bf16.msra.mxu0 %v541
        %624 = vmatprep.subr.bf16.mxu0 0
        %625 = vmatpush1.bf16.msra.mxu0 %v542
        %626 = vmatprep.subr.bf16.mxu0 0
        %627 = vmatpush1.bf16.msra.mxu0 %v543
        %628 = vmatprep.subr.bf16.mxu0 0
        %629 = vmatpush1.bf16.msra.mxu0 %v544
        %630 = vmatprep.subr.bf16.mxu0 0
        %631 = vmatpush1.bf16.msra.mxu0 %v545
        %632 = vmatprep.subr.bf16.mxu0 0
        %633 = vmatpush1.bf16.msra.mxu0 %v546
        %634 = vmatprep.subr.bf16.mxu0 0
        %635 = vmatpush1.bf16.msra.mxu0 %v547
        %636 = vmatprep.subr.bf16.mxu0 0
        %637 = vmatpush1.bf16.msra.mxu0 0
        %638 = vmatprep.subr.bf16.mxu0 0
        %639 = vmatpush1.bf16.msra.mxu0 0
        %640 = vmatprep.subr.bf16.mxu0 0
        %641 = vmatpush1.bf16.msra.mxu0 0
        %642 = vmatprep.subr.bf16.mxu0 0
        %643 = vmatpush1.bf16.msra.mxu0 0
        %644 = vmatprep.subr.bf16.mxu0 0
        %645 = vmatpush1.bf16.msra.mxu0 0
        %646 = vmatprep.subr.bf16.mxu0 0
        %647 = vmatpush1.bf16.msra.mxu0 0
        %648 = vmatprep.subr.bf16.mxu0 0
        %649 = vmatpush1.bf16.msra.mxu0 0
        %650 = vmatprep.subr.bf16.mxu0 0
        %651 = vmatpush1.bf16.msra.mxu0 0
        %652 = vmatprep.mubr.bf16.mxu0 0
        %653 = vmatmul.mubr.bf16.gmra.mrb[0].mxu0 %v418
        %v654 = vpop.f32.mrb[0].mxu0
        %v655 = vadd.f32 %v607, %v654
        %v656 = vpop.f32.mrb[0].mxu0
        %v657 = vpop.f32.mrb[0].mxu0
        %v658 = vadd.f32 %v610, %v657
        %v659 = vpop.f32.mrb[0].mxu0
        %660 = vmatprep.mubr.bf16.mxu0 0
        %661 = vmatmul.mubr.bf16.gmra.mrb[0].mxu0 %v421
        %v662 = vpop.f32.mrb[0].mxu0
        %v663 = vadd.f32 %v615, %v662
        %v664 = vpop.f32.mrb[0].mxu0
        %v665 = vpop.f32.mrb[0].mxu0
        %v666 = vpop.f32.mrb[0].mxu0
        %667 = vdwg.mxu0
        %v668 = vlaneseq
        %v669 = vshrl.u32 %v668, 7
        %v670 = vadd.s32 %v669, 8
        %v671 = vadd.s32 %v669, 16
        %s672 = smul.u32 %s27, 16
        %s673 = ssub.s32 %s672, 2
        %v674 = vstv %s673
        %v675 = vadd.s32 %v674, %v669
        %v676 = vadd.s32 %v674, %v670
        %v677 = vadd.s32 %v674, %v671
        %vm678 = vcmp.ge.s32.totalorder %v675, 0
        %vm679 = vcmp.ge.s32.totalorder %v676, 0
        %vm680 = vcmp.ge.s32.totalorder %v677, 0
        %vm681 = vcmp.lt.s32.totalorder %v675, 16
        %vm682 = vcmp.lt.s32.totalorder %v676, 16
        %vm683 = vcmp.lt.s32.totalorder %v677, 16
        %vm684 = vmand %vm678, %vm681
        %vm685 = vmand %vm679, %vm682
        %vm686 = vmand %vm680, %vm683
        %v687 = vmul.f32 %v655, 0.5
        %v688 = vmul.f32 %v658, 0.5
        %v689 = vmul.f32 %v663, 0.5
        %v690 = vmul.f32 %v655, %v655
        %v691 = vmul.f32 %v658, %v658
        %v692 = vmul.f32 %v663, %v663
        %v693 = vmul.f32 %v690, %v655
        %v694 = vmul.f32 %v691, %v658
        %v695 = vmul.f32 %v692, %v663
        %v696 = vmul.f32 %v693, 0.044715
        %v697 = vmul.f32 %v694, 0.044715
        %v698 = vmul.f32 %v695, 0.044715
        %v699 = vadd.f32 %v655, %v696
        %v700 = vadd.f32 %v658, %v697
        %v701 = vadd.f32 %v663, %v698
        %v702 = vmul.f32 %v699, 0.7978846
        %v703 = vmul.f32 %v700, 0.7978846
        %v704 = vmul.f32 %v701, 0.7978846
        %v705 = vtanh.pop %v702
        %v706 = vtanh.pop %v703
        %v707 = vtanh.pop %v704
        %v708 = vadd.f32 %v705, 1.0
        %v709 = vadd.f32 %v706, 1.0
        %v710 = vadd.f32 %v707, 1.0
        %v711 = vmul.f32 %v687, %v708
        %v712 = vmul.f32 %v688, %v709
        %v713 = vmul.f32 %v689, %v710
        %v714 = vsel %vm684, 1, 0
        %v715 = vsel %vm685, 1, 0
        %v716 = vsel %vm686, 1, 0
        %vm717 = vcmp.eq.s32.totalorder %v714, 1
        %vm718 = vcmp.eq.s32.totalorder %v715, 1
        %vm719 = vcmp.eq.s32.totalorder %v716, 1
        %v720 = vsel %vm717, %v711, 0.0
        %v721 = vsel %vm718, %v712, 0.0
        %v722 = vsel %vm719, %v713, 0.0
        %v723 = vpack.c.bf16 %v721, %v720
        %v724 = vpack.c.bf16 %v722, %v722
        %v727 = vunpack.c.l.b16 %v723
        %v728 = vunpack.c.h.b16 %v723
        %v729 = vunpack.c.l.b16 %v724
        %v730 = vpack.c.b16 %v727, %v727
        %v731 = vpack.c.b16 %v728, %v728
        %v732 = vpack.c.b16 %v729, %v729
        %736 = vst [vmem:[#allocation4] sm:$0xf] %v730
        %737 = vst [vmem:[#allocation4 + $0x4] sm:$0xf] %v731
        %738 = vst [vmem:[#allocation4 + $0x8] sm:$0x3] %v732
        %v739 = vld [vmem:[#allocation5] sm:$0xff]
        %v740 = vld [vmem:[#allocation5 + $0x8] sm:$0xff]
        %v741 = vld [vmem:[#allocation4] sm:$0xf]
        %v742 = vld [vmem:[#allocation4 + $0x4] sm:$0xf]
        %v743 = vld [vmem:[#allocation10] sm:$0xf]
        %v744 = vld [vmem:[#allocation10 + $0x4] sm:$0xf]
        %v745 = vld [vmem:[#allocation10 + $0x8] sm:$0xf]
        %v746 = vld [vmem:[#allocation10 + $0xc] sm:$0xf]
        %v747 = vld [vmem:[#allocation10 + $0x10] sm:$0xf]
        %v748 = vld [vmem:[#allocation10 + $0x14] sm:$0xf]
        %v749 = vld [vmem:[#allocation10 + $0x18] sm:$0xf]
        %v750 = vld [vmem:[#allocation10 + $0x1c] sm:$0xf]
        %v751 = vld [vmem:[#allocation10 + $0x20] sm:$0xf]
        %v752 = vld [vmem:[#allocation10 + $0x24] sm:$0xf]
        %v753 = vld [vmem:[#allocation10 + $0x28] sm:$0xf]
        %v754 = vld [vmem:[#allocation10 + $0x2c] sm:$0xf]
        %v755 = vld [vmem:[#allocation10 + $0x30] sm:$0xf]
        %v756 = vld [vmem:[#allocation10 + $0x34] sm:$0xf]
        %v757 = vld [vmem:[#allocation10 + $0x38] sm:$0xf]
        %v758 = vld [vmem:[#allocation10 + $0x3c] sm:$0xf]
        %v761 = vunpack.c.l.b16 %v741
        %v762 = vunpack.c.l.b16 %v742
        %v763 = vpack.c.b16 %v762, %v761
        %v781 = vunpack.c.l.b16 %v743
        %v782 = vunpack.c.l.b16 %v744
        %v783 = vunpack.c.l.b16 %v745
        %v784 = vunpack.c.l.b16 %v746
        %v785 = vunpack.c.l.b16 %v747
        %v786 = vunpack.c.l.b16 %v748
        %v787 = vunpack.c.l.b16 %v749
        %v788 = vunpack.c.l.b16 %v750
        %v789 = vunpack.c.l.b16 %v751
        %v790 = vunpack.c.l.b16 %v752
        %v791 = vunpack.c.l.b16 %v753
        %v792 = vunpack.c.l.b16 %v754
        %v793 = vunpack.c.l.b16 %v755
        %v794 = vunpack.c.l.b16 %v756
        %v795 = vunpack.c.l.b16 %v757
        %v796 = vunpack.c.l.b16 %v758
        %v797 = vpack.c.b16 %v782, %v781
        %v798 = vpack.c.b16 %v784, %v783
        %v799 = vpack.c.b16 %v786, %v785
        %v800 = vpack.c.b16 %v788, %v787
        %v801 = vpack.c.b16 %v790, %v789
        %v802 = vpack.c.b16 %v792, %v791
        %v803 = vpack.c.b16 %v794, %v793
        %v804 = vpack.c.b16 %v796, %v795
        %813 = vmatprep.subr.bf16.mxu0 0
        %814 = vmatpush1.bf16.msra.mxu0 %v797
        %815 = vmatprep.subr.bf16.mxu0 0
        %816 = vmatpush1.bf16.msra.mxu0 %v798
        %817 = vmatprep.subr.bf16.mxu0 0
        %818 = vmatpush1.bf16.msra.mxu0 %v799
        %819 = vmatprep.subr.bf16.mxu0 0
        %820 = vmatpush1.bf16.msra.mxu0 %v800
        %821 = vmatprep.subr.bf16.mxu0 0
        %822 = vmatpush1.bf16.msra.mxu0 %v801
        %823 = vmatprep.subr.bf16.mxu0 0
        %824 = vmatpush1.bf16.msra.mxu0 %v802
        %825 = vmatprep.subr.bf16.mxu0 0
        %826 = vmatpush1.bf16.msra.mxu0 %v803
        %827 = vmatprep.subr.bf16.mxu0 0
        %828 = vmatpush1.bf16.msra.mxu0 %v804
        %829 = vmatprep.subr.bf16.mxu0 0
        %830 = vmatpush1.bf16.msra.mxu0 0
        %831 = vmatprep.subr.bf16.mxu0 0
        %832 = vmatpush1.bf16.msra.mxu0 0
        %833 = vmatprep.subr.bf16.mxu0 0
        %834 = vmatpush1.bf16.msra.mxu0 0
        %835 = vmatprep.subr.bf16.mxu0 0
        %836 = vmatpush1.bf16.msra.mxu0 0
        %837 = vmatprep.subr.bf16.mxu0 0
        %838 = vmatpush1.bf16.msra.mxu0 0
        %839 = vmatprep.subr.bf16.mxu0 0
        %840 = vmatpush1.bf16.msra.mxu0 0
        %841 = vmatprep.subr.bf16.mxu0 0
        %842 = vmatpush1.bf16.msra.mxu0 0
        %843 = vmatprep.subr.bf16.mxu0 0
        %844 = vmatpush1.bf16.msra.mxu0 0
        %845 = vmatprep.mubr.bf16.mxu0 0
        %846 = vmatmul.mubr.bf16.gmra.mrb[0].mxu0 %v763
        %v847 = vpop.f32.mrb[0].mxu0
        %v848 = vadd.f32 0.0, %v847
        %v849 = vpop.f32.mrb[0].mxu0
        %v850 = vpop.f32.mrb[0].mxu0
        %v851 = vadd.f32 0.0, %v850
        %v852 = vpop.f32.mrb[0].mxu0
        %853 = vdwg.mxu0
        %v854 = vadd.f32 %v739, %v848
        %v855 = vadd.f32 %v740, %v851
        %v856 = vld [vmem:[#allocation4] sm:$0xe]
        %v857 = vld [vmem:[#allocation4 + $0x4] sm:$0xf]
        %v858 = vld [vmem:[#allocation4 + $0x8] sm:$0x1]
        %s859 = scalar_lea.vmem [#allocation10], 64
        %v860 = vld [vmem:[%s859] sm:$0xf]
        %v861 = vld [vmem:[%s859 + $0x4] sm:$0xf]
        %v862 = vld [vmem:[%s859 + $0x8] sm:$0xf]
        %v863 = vld [vmem:[%s859 + $0xc] sm:$0xf]
        %v864 = vld [vmem:[%s859 + $0x10] sm:$0xf]
        %v865 = vld [vmem:[%s859 + $0x14] sm:$0xf]
        %v866 = vld [vmem:[%s859 + $0x18] sm:$0xf]
        %v867 = vld [vmem:[%s859 + $0x1c] sm:$0xf]
        %v868 = vld [vmem:[%s859 + $0x20] sm:$0xf]
        %v869 = vld [vmem:[%s859 + $0x24] sm:$0xf]
        %v870 = vld [vmem:[%s859 + $0x28] sm:$0xf]
        %v871 = vld [vmem:[%s859 + $0x2c] sm:$0xf]
        %v872 = vld [vmem:[%s859 + $0x30] sm:$0xf]
        %v873 = vld [vmem:[%s859 + $0x34] sm:$0xf]
        %v874 = vld [vmem:[%s859 + $0x38] sm:$0xf]
        %v875 = vld [vmem:[%s859 + $0x3c] sm:$0xf]
        %v879 = vunpack.c.l.b16 %v856
        %v880 = vunpack.c.l.b16 %v857
        %v881 = vunpack.c.l.b16 %v858
        %v882 = vpack.c.b16 %v880, %v879
        %v883 = vpack.c.b16 %v881, %v881
        %vm884 = vcmask 1046528
        %v885 = vrot.slane %v882, 1
        %v886 = vrot.slane %v883, 1
        %v887 = vsel %vm884, %v885, %v886
        %v905 = vunpack.c.l.b16 %v860
        %v906 = vunpack.c.l.b16 %v861
        %v907 = vunpack.c.l.b16 %v862
        %v908 = vunpack.c.l.b16 %v863
        %v909 = vunpack.c.l.b16 %v864
        %v910 = vunpack.c.l.b16 %v865
        %v911 = vunpack.c.l.b16 %v866
        %v912 = vunpack.c.l.b16 %v867
        %v913 = vunpack.c.l.b16 %v868
        %v914 = vunpack.c.l.b16 %v869
        %v915 = vunpack.c.l.b16 %v870
        %v916 = vunpack.c.l.b16 %v871
        %v917 = vunpack.c.l.b16 %v872
        %v918 = vunpack.c.l.b16 %v873
        %v919 = vunpack.c.l.b16 %v874
        %v920 = vunpack.c.l.b16 %v875
        %v921 = vpack.c.b16 %v906, %v905
        %v922 = vpack.c.b16 %v908, %v907
        %v923 = vpack.c.b16 %v910, %v909
        %v924 = vpack.c.b16 %v912, %v911
        %v925 = vpack.c.b16 %v914, %v913
        %v926 = vpack.c.b16 %v916, %v915
        %v927 = vpack.c.b16 %v918, %v917
        %v928 = vpack.c.b16 %v920, %v919
        %937 = vmatprep.subr.bf16.mxu0 0
        %938 = vmatpush1.bf16.msra.mxu0 %v921
        %939 = vmatprep.subr.bf16.mxu0 0
        %940 = vmatpush1.bf16.msra.mxu0 %v922
        %941 = vmatprep.subr.bf16.mxu0 0
        %942 = vmatpush1.bf16.msra.mxu0 %v923
        %943 = vmatprep.subr.bf16.mxu0 0
        %944 = vmatpush1.bf16.msra.mxu0 %v924
        %945 = vmatprep.subr.bf16.mxu0 0
        %946 = vmatpush1.bf16.msra.mxu0 %v925
        %947 = vmatprep.subr.bf16.mxu0 0
        %948 = vmatpush1.bf16.msra.mxu0 %v926
        %949 = vmatprep.subr.bf16.mxu0 0
        %950 = vmatpush1.bf16.msra.mxu0 %v927
        %951 = vmatprep.subr.bf16.mxu0 0
        %952 = vmatpush1.bf16.msra.mxu0 %v928
        %953 = vmatprep.subr.bf16.mxu0 0
        %954 = vmatpush1.bf16.msra.mxu0 0
        %955 = vmatprep.subr.bf16.mxu0 0
        %956 = vmatpush1.bf16.msra.mxu0 0
        %957 = vmatprep.subr.bf16.mxu0 0
        %958 = vmatpush1.bf16.msra.mxu0 0
        %959 = vmatprep.subr.bf16.mxu0 0
        %960 = vmatpush1.bf16.msra.mxu0 0
        %961 = vmatprep.subr.bf16.mxu0 0
        %962 = vmatpush1.bf16.msra.mxu0 0
        %963 = vmatprep.subr.bf16.mxu0 0
        %964 = vmatpush1.bf16.msra.mxu0 0
        %965 = vmatprep.subr.bf16.mxu0 0
        %966 = vmatpush1.bf16.msra.mxu0 0
        %967 = vmatprep.subr.bf16.mxu0 0
        %968 = vmatpush1.bf16.msra.mxu0 0
        %969 = vmatprep.mubr.bf16.mxu0 0
        %970 = vmatmul.mubr.bf16.gmra.mrb[0].mxu0 %v887
        %v971 = vpop.f32.mrb[0].mxu0
        %v972 = vadd.f32 0.0, %v971
        %v973 = vpop.f32.mrb[0].mxu0
        %v974 = vpop.f32.mrb[0].mxu0
        %v975 = vadd.f32 0.0, %v974
        %v976 = vpop.f32.mrb[0].mxu0
        %977 = vdwg.mxu0
        %v978 = vadd.f32 %v854, %v972
        %v979 = vadd.f32 %v855, %v975
        %v980 = vld [vmem:[#allocation4] sm:$0xc]
        %v981 = vld [vmem:[#allocation4 + $0x8] sm:$0x3]
        %s982 = scalar_lea.vmem [#allocation10], 128
        %v983 = vld [vmem:[%s982] sm:$0xf]
        %v984 = vld [vmem:[%s982 + $0x4] sm:$0xf]
        %v985 = vld [vmem:[%s982 + $0x8] sm:$0xf]
        %v986 = vld [vmem:[%s982 + $0xc] sm:$0xf]
        %v987 = vld [vmem:[%s982 + $0x10] sm:$0xf]
        %v988 = vld [vmem:[%s982 + $0x14] sm:$0xf]
        %v989 = vld [vmem:[%s982 + $0x18] sm:$0xf]
        %v990 = vld [vmem:[%s982 + $0x1c] sm:$0xf]
        %v991 = vld [vmem:[%s982 + $0x20] sm:$0xf]
        %v992 = vld [vmem:[%s982 + $0x24] sm:$0xf]
        %v993 = vld [vmem:[%s982 + $0x28] sm:$0xf]
        %v994 = vld [vmem:[%s982 + $0x2c] sm:$0xf]
        %v995 = vld [vmem:[%s982 + $0x30] sm:$0xf]
        %v996 = vld [vmem:[%s982 + $0x34] sm:$0xf]
        %v997 = vld [vmem:[%s982 + $0x38] sm:$0xf]
        %v998 = vld [vmem:[%s982 + $0x3c] sm:$0xf]
        %v1001 = vunpack.c.l.b16 %v980
        %v1002 = vunpack.c.l.b16 %v981
        %v1003 = vpack.c.b16 %v880, %v1001
        %v1004 = vpack.c.b16 %v1002, %v1002
        %vm1005 = vcmask 1045504
        %v1006 = vrot.slane %v1003, 2
        %v1007 = vrot.slane %v1004, 2
        %v1008 = vsel %vm1005, %v1006, %v1007
        %v1026 = vunpack.c.l.b16 %v983
        %v1027 = vunpack.c.l.b16 %v984
        %v1028 = vunpack.c.l.b16 %v985
        %v1029 = vunpack.c.l.b16 %v986
        %v1030 = vunpack.c.l.b16 %v987
        %v1031 = vunpack.c.l.b16 %v988
        %v1032 = vunpack.c.l.b16 %v989
        %v1033 = vunpack.c.l.b16 %v990
        %v1034 = vunpack.c.l.b16 %v991
        %v1035 = vunpack.c.l.b16 %v992
        %v1036 = vunpack.c.l.b16 %v993
        %v1037 = vunpack.c.l.b16 %v994
        %v1038 = vunpack.c.l.b16 %v995
        %v1039 = vunpack.c.l.b16 %v996
        %v1040 = vunpack.c.l.b16 %v997
        %v1041 = vunpack.c.l.b16 %v998
        %v1042 = vpack.c.b16 %v1027, %v1026
        %v1043 = vpack.c.b16 %v1029, %v1028
        %v1044 = vpack.c.b16 %v1031, %v1030
        %v1045 = vpack.c.b16 %v1033, %v1032
        %v1046 = vpack.c.b16 %v1035, %v1034
        %v1047 = vpack.c.b16 %v1037, %v1036
        %v1048 = vpack.c.b16 %v1039, %v1038
        %v1049 = vpack.c.b16 %v1041, %v1040
        %1058 = vmatprep.subr.bf16.mxu0 0
        %1059 = vmatpush1.bf16.msra.mxu0 %v1042
        %1060 = vmatprep.subr.bf16.mxu0 0
        %1061 = vmatpush1.bf16.msra.mxu0 %v1043
        %1062 = vmatprep.subr.bf16.mxu0 0
        %1063 = vmatpush1.bf16.msra.mxu0 %v1044
        %1064 = vmatprep.subr.bf16.mxu0 0
        %1065 = vmatpush1.bf16.msra.mxu0 %v1045
        %1066 = vmatprep.subr.bf16.mxu0 0
        %1067 = vmatpush1.bf16.msra.mxu0 %v1046
        %1068 = vmatprep.subr.bf16.mxu0 0
        %1069 = vmatpush1.bf16.msra.mxu0 %v1047
        %1070 = vmatprep.subr.bf16.mxu0 0
        %1071 = vmatpush1.bf16.msra.mxu0 %v1048
        %1072 = vmatprep.subr.bf16.mxu0 0
        %1073 = vmatpush1.bf16.msra.mxu0 %v1049
        %1074 = vmatprep.subr.bf16.mxu0 0
        %1075 = vmatpush1.bf16.msra.mxu0 0
        %1076 = vmatprep.subr.bf16.mxu0 0
        %1077 = vmatpush1.bf16.msra.mxu0 0
        %1078 = vmatprep.subr.bf16.mxu0 0
        %1079 = vmatpush1.bf16.msra.mxu0 0
        %1080 = vmatprep.subr.bf16.mxu0 0
        %1081 = vmatpush1.bf16.msra.mxu0 0
        %1082 = vmatprep.subr.bf16.mxu0 0
        %1083 = vmatpush1.bf16.msra.mxu0 0
        %1084 = vmatprep.subr.bf16.mxu0 0
        %1085 = vmatpush1.bf16.msra.mxu0 0
        %1086 = vmatprep.subr.bf16.mxu0 0
        %1087 = vmatpush1.bf16.msra.mxu0 0
        %1088 = vmatprep.subr.bf16.mxu0 0
        %1089 = vmatpush1.bf16.msra.mxu0 0
        %1090 = vmatprep.mubr.bf16.mxu0 0
        %1091 = vmatmul.mubr.bf16.gmra.mrb[0].mxu0 %v1008
        %v1092 = vpop.f32.mrb[0].mxu0
        %v1093 = vadd.f32 0.0, %v1092
        %v1094 = vpop.f32.mrb[0].mxu0
        %v1095 = vpop.f32.mrb[0].mxu0
        %v1096 = vadd.f32 0.0, %v1095
        %v1097 = vpop.f32.mrb[0].mxu0
        %1098 = vdwg.mxu0
        %v1099 = vadd.f32 %v978, %v1093
        %v1100 = vadd.f32 %v979, %v1096
        %1101 = vst [vmem:[#allocation5] sm:$0xff] %v1099
        %1102 = vst [vmem:[#allocation5 + $0x8] sm:$0xff] %v1100
        // Predicated region
        $region53: #{tpu_custom_call.1} parent=35 // pred_check
          %p1103 = pneg %p260
        $region54: #{tpu_custom_call.1} parent=35 // pred_check_branch
          %1105 = sbr.rel (%p1103) target = $region56
        $region55: #{tpu_custom_call.1} parent=35 // pred_region
          %v1106 = vld [vmem:[#allocation5] sm:$0xff]
          %v1107 = vld [vmem:[#allocation5 + $0x8] sm:$0xff]
          %v1108 = vld [vmem:[%s4] sm:$0x1]
          %v1110 = vlaneseq
          %v1111 = vshrl.u32 %v1110, 7
          %v1112 = vsub.s32 0, %v1111
          %v1113 = vrot.slane %v1108, %v1112
          %v1115 = vadd.f32 %v1106, %v1113
          %v1116 = vadd.f32 %v1107, %v1113
          %1117 = vst [vmem:[%s253] sm:$0xff] %v1115
          %1118 = vst [vmem:[%s253 + $0x8] sm:$0xff] %v1116
        $region56: #{tpu_custom_call.1} parent=35 // pred_fallthru
          _
        %s1119 = sand.u32 %s149, 1
        %s1120 = scalar_lea.sflag [#allocation9], %s1119
        %s1121 = sand.u32 %s149, 1
        %s1122 = smul.addr %s1121, 16
        %s1123 = scalar_lea.vmem [#allocation12], %s1122
        // Predicated region
        $region57: #{tpu_custom_call.1} parent=35 // pred_check
          %p1124 = pneg %p159
        $region58: #{tpu_custom_call.1} parent=35 // pred_check_branch
          %1126 = sbr.rel (%p1124) target = $region60
        $region59: #{tpu_custom_call.1} parent=35 // pred_region
          %s1127 = smul.u32 2, %s27
          %s1129 = ssub.s32 256, 256
          %1130 = vsyncadd %s1120, %s1129
          %s1131 = smul.addr %s26, 2
          %s1132 = sadd.s32 %s1127, %s1131
          %s1133 = smul.addr %s1132, 128
          %s1134 = scalar_lea.hbm %s5, %s1133
          %s1135 = sshll.u32 %s1123, 4
          %s1136 = int_to_ptr.vmem [resolvable:$true] %s1135
          %1141 = dma.vmem_to_hbm [thread:$0]  %s1136, 256, %s1134, %s1120, 128, 128, 8
        $region60: #{tpu_custom_call.1} parent=35 // pred_fallthru
          _
      $region36: #{tpu_custom_call.1} parent=5 // pred_fallthru
        _
      %p1142 = scmp.le.s32.totalorder 2, %s16
      // Predicated region
      $region61: #{tpu_custom_call.1} parent=5 // pred_check
        %p1143 = pneg %p1142
      $region62: #{tpu_custom_call.1} parent=5 // pred_check_branch
        %1145 = sbr.rel (%p1143) target = $region64
      $region63: #{tpu_custom_call.1} parent=5 // pred_region
        %s1146 = ssub.s32 %s16, 2
        // Predicated region
        $region65: #{tpu_custom_call.1} parent=63 // pred_check
          %p1147 = pneg %p165
        $region66: #{tpu_custom_call.1} parent=63 // pred_check_branch
          %1149 = sbr.rel (%p1147) target = $region68
        $region67: #{tpu_custom_call.1} parent=63 // pred_region
          %s1150 = sand.u32 %s150, 1
          %s1151 = scalar_lea.sflag [#allocation9], %s1150
          %s1152 = sand.u32 %s150, 1
          %s1153 = smul.addr %s1152, 16
          %s1154 = scalar_lea.vmem [#allocation12], %s1153
          %1155 = dma.done %s1151, 256
        $region68: #{tpu_custom_call.1} parent=63 // pred_fallthru
          _
      $region64: #{tpu_custom_call.1} parent=5 // pred_fallthru
        _
    $region6: #{tpu_custom_call.1} parent=1 // loop_footer
      %s20 = sadd.s32 1, %s16
    $region7: #{tpu_custom_call.1} parent=1 // loop_footer_branch
      %15 = sbr.rel target = $region3
    $region8: #{tpu_custom_call.1} parent=1 // loop_exit
      _
    %1156 = vsyncpa [#allocation8], 1
    %s1157 = scalar_lea.sflag [#allocation8], 1
    %1158 = vsyncpa %s1157, 1
    %1159 = vsyncpa [#allocation11], 1
    %1160 = vsyncpa [#allocation9], 1
    %s1161 = scalar_lea.sflag [#allocation9], 1
    %1162 = vsyncpa %s1161, 1
  %1163 = vsyncmov [#allocation6]
  %s1164 = vpop.sfrf %1163
  %p1165 = scmp.eq.s32.totalorder %s1164, 0
  %p1166 = pneg %p1165
  %1168 = shalt.err (%p1166)

</llo_original>
